<compile_context>
chip_gen: v5e
topology: v5e:2x2
jax: 0.10.0
libtpu: 0.0.40
codegen_flags: <defaults>
</compile_context>

<pallas_src>
import functools
import math
import numpy as np

import jax
import jax.numpy as jnp
from jax.experimental import pallas as pl
from jax.experimental.pallas import tpu as pltpu


def _logf_arithmetic_kernel(scal_ref, xT_ref, acat_ref, bcat_ref, o_ref, *, D):
    """One lane-tile of samples.

    scal_ref : (4,)    SMEM   [w0, w1, const_p, const_t]
    xT_ref   : (D, TN) VMEM   samples on the lane axis
    acat_ref : (2D, D) VMEM   stacked scaled precisions [-0.5*P_p ; -0.5*P_t]
    bcat_ref : (2D, 1) VMEM   stacked [P_p @ mu_p ; P_t @ mu_t]
    o_ref    : (1, TN) VMEM   lane-dense output row
    """
    xT = xT_ref[...]                                                     # (D, TN)

    # Single MXU push for both (scaled) quadratic forms: Z = A @ x^T + b
    z = jnp.dot(acat_ref[...], xT, preferred_element_type=jnp.float32)   # (2D, TN)
    z = z + bcat_ref[...]                                                # lanes broadcast

    # -0.5 x^T P x + (P mu)^T x   per sample; sublane reduce rides the XLU slot.
    s_p = jnp.sum(xT * z[:D, :], axis=0, keepdims=True)                  # (1, TN)
    s_t = jnp.sum(xT * z[D:, :], axis=0, keepdims=True)                  # (1, TN)

    w0 = scal_ref[0]
    w1 = scal_ref[1]
    logf_p = s_p + scal_ref[2]
    logf_t = s_t + scal_ref[3]

    # scipy-style weighted 2-way logsumexp (zero-weight components masked for
    # robustness at t == 0 or t == 1).
    neg_big = jnp.float32(-1e30)
    lp = jnp.where(w0 > 0.0, logf_p, neg_big)
    lt = jnp.where(w1 > 0.0, logf_t, neg_big)
    m = jnp.maximum(lp, lt)
    o_ref[...] = m + jnp.log(w0 * jnp.exp(lp - m) + w1 * jnp.exp(lt - m))


def logf_arithmetic(x, loc_p, cov_p, loc_t, cov_t, t,
                    proposal_logZ=0.0, target_logZ=0.0, block_cols=1024):
    """Arithmetic-path log unnormalized density logf(x, t) for MVN proposal/target.

    x: (N, D) float32.  Returns (N,) float32.  Works for arbitrary N (zero-padded
    internally) and compiles once across different t / logZ values.
    """
    x = x.astype(jnp.float32)
    N, D = x.shape

    # Lane tile: multiple of 128, clipped to the (padded) problem size.
    n_lane = 128 * math.ceil(N / 128)
    tn = max(128, min(128 * math.ceil(block_cols / 128), n_lane))
    n_pad = tn * math.ceil(n_lane / tn)
    num_tiles = n_pad // tn

    # ---- plain-JAX glue: tiny DxD Gaussian constants ----
    cov_p = cov_p.astype(jnp.float32)
    cov_t = cov_t.astype(jnp.float32)
    loc_p = loc_p.astype(jnp.float32)
    loc_t = loc_t.astype(jnp.float32)
    prec_p = jnp.linalg.inv(cov_p)
    prec_t = jnp.linalg.inv(cov_t)
    _, logdet_p = jnp.linalg.slogdet(cov_p)
    _, logdet_t = jnp.linalg.slogdet(cov_t)
    log2pi = math.log(2.0 * math.pi)

    b_p = prec_p @ loc_p                                   # (D,)  = P_p mu_p
    b_t = prec_t @ loc_t                                   # (D,)  = P_t mu_t
    const_p = (-0.5 * (D * log2pi) - 0.5 * logdet_p + proposal_logZ
               - 0.5 * jnp.dot(loc_p, b_p))
    const_t = (-0.5 * (D * log2pi) - 0.5 * logdet_t + target_logZ
               - 0.5 * jnp.dot(loc_t, b_t))

    t_arr = jnp.asarray(t, dtype=jnp.float32)
    scal = jnp.stack([1.0 - t_arr, t_arr,
                      jnp.asarray(const_p, jnp.float32),
                      jnp.asarray(const_t, jnp.float32)]).astype(jnp.float32)

    # Fold the -0.5 quadratic scale into the stacked precision matrices so the
    # kernel's per-lane work is just mul + add + reduce.
    a_cat = -0.5 * jnp.concatenate([prec_p, prec_t], axis=0)   # (2D, D)
    b_cat = jnp.concatenate([b_p, b_t], axis=0)[:, None]       # (2D, 1)

    # Samples on the lane axis, zero-padded to a multiple of the lane tile.
    xT = jnp.zeros((D, n_pad), jnp.float32).at[:, :N].set(x.T)

    kernel = functools.partial(_logf_arithmetic_kernel, D=D)

    cost = pl.CostEstimate(
        flops=2 * n_pad * D * (2 * D) + 10 * n_pad * D,
        transcendentals=3 * n_pad,
        bytes_accessed=n_pad * D * 4 + n_pad * 4 + 2 * D * D * 4 + 2 * D * 4 + 16,
    )

    out = pl.pallas_call(
        kernel,
        out_shape=jax.ShapeDtypeStruct((1, n_pad), jnp.float32),
        grid_spec=pltpu.PrefetchScalarGridSpec(
            num_scalar_prefetch=0,
            grid=(num_tiles,),
            in_specs=[
                pl.BlockSpec(memory_space=pltpu.MemorySpace.SMEM),   # [w0,w1,c_p,c_t]
                pl.BlockSpec((D, tn), lambda i: (0, i)),             # x^T lane tile
                pl.BlockSpec((2 * D, D), lambda i: (0, 0)),          # [-P_p/2 ; -P_t/2]
                pl.BlockSpec((2 * D, 1), lambda i: (0, 0)),          # [P_p mu_p ; P_t mu_t]
            ],
            out_specs=pl.BlockSpec((1, tn), lambda i: (0, i)),       # lane-dense output
        ),
        compiler_params=pltpu.CompilerParams(
            dimension_semantics=("parallel",)),
        cost_estimate=cost,
    )(scal, xT, a_cat, b_cat)
    return out[0, :N]


def _logf_arithmetic_ref(x, loc_p, cov_p, loc_t, cov_t, t,
                         proposal_logZ=0.0, target_logZ=0.0):
    """Pure-JAX reference (mirrors scipy.special.logsumexp(a, b=[1-t, t]) semantics)."""
    def mvn_logprob(x, loc, cov):
        D = x.shape[-1]
        prec = jnp.linalg.inv(cov)
        _, logdet = jnp.linalg.slogdet(cov)
        dx = x - loc
        quad = jnp.einsum('nd,de,ne->n', dx, prec, dx)
        return -0.5 * quad - 0.5 * (D * jnp.log(2 * jnp.pi) + logdet)

    lp = mvn_logprob(x, loc_p, cov_p) + proposal_logZ
    lt = mvn_logprob(x, loc_t, cov_t) + target_logZ
    a = jnp.stack([lp, lt], axis=-1)
    b = jnp.array([1.0 - t, t], dtype=jnp.float32)[None, :]
    a_m = jnp.where(b > 0, a, -jnp.inf)
    m = jnp.max(a_m, axis=-1, keepdims=True)
    return (m + jnp.log(jnp.sum(b * jnp.exp(a_m - m), axis=-1, keepdims=True)))[:, 0]


if __name__ == "__main__":
    key = jax.random.PRNGKey(0)
    N, D = 16, 8          # sample_shape=(16,), n_comp=8
    proposal_logZ = 0.0
    target_logZ = 0.5

    k1, k2, _ = jax.random.split(key, 3)
    x = jax.random.normal(k1, (N, D), dtype=jnp.float32)

    # Deterministic synthetic proposal / target MVN parameters.
    loc_p = jnp.zeros((D,), dtype=jnp.float32)
    cov_p = jnp.eye(D, dtype=jnp.float32)
    loc_t = 0.5 * jnp.arange(D, dtype=jnp.float32) / D
    a = 0.1 * jax.random.normal(k2, (D, D), dtype=jnp.float32)
    cov_t = jnp.eye(D, dtype=jnp.float32) + a @ a.T   # SPD

    for t in (0.3, 1.0):   # includes the w0 == 0 edge case
        out = logf_arithmetic(x, loc_p, cov_p, loc_t, cov_t, t,
                              proposal_logZ=proposal_logZ, target_logZ=target_logZ)
        out = jax.block_until_ready(out)
        ref = _logf_arithmetic_ref(x, loc_p, cov_p, loc_t, cov_t, t,
                                   proposal_logZ=proposal_logZ, target_logZ=target_logZ)
        np.testing.assert_allclose(np.asarray(out), np.asarray(ref),
                                   rtol=1e-4, atol=1e-4)

    # TODO(synk): geometric/optimal paths and sample() need per-call DxD solve/det and
    # Bernoulli mixing; those are scalar-sized linear algebra / RNG and stay in plain JAX.
    print("KERNEL_OK")
</pallas_src>

<mosaic_0001>
module attributes {stable_mosaic.version = 11 : i64} {
  func.func @_logf_arithmetic_kernel(%arg0: i32, %arg1: memref<4xf32, #tpu.memory_space<smem>>, %arg2: memref<8x128xf32, #tpu.memory_space<vmem>>, %arg3: memref<16x8xf32, #tpu.memory_space<vmem>>, %arg4: memref<16x1xf32, #tpu.memory_space<vmem>>, %arg5: memref<1x128xf32, #tpu.memory_space<vmem>>) attributes {dimension_semantics = [#tpu.dimension_semantics<parallel>], iteration_bounds = array<i64: 1>, scalar_prefetch = 0 : i64, scratch_operands = 0 : i64, tpu.core_type = #tpu.core_type<tc>, window_params = [{transform_indices = @transform_0, window_bounds = array<i64: 4>}, {transform_indices = @transform_1, window_bounds = array<i64: 8, 128>}, {pipeline_mode = #tpu.pipeline_mode<synchronous>, transform_indices = @transform_2, window_bounds = array<i64: 16, 8>}, {pipeline_mode = #tpu.pipeline_mode<synchronous>, transform_indices = @transform_3, window_bounds = array<i64: 16, 1>}, {transform_indices = @transform_4, window_bounds = array<i64: 1, 128>}]} {
    %c0 = arith.constant 0 : index
    %c0_0 = arith.constant 0 : index
    %0 = vector.load %arg2[%c0, %c0_0] : memref<8x128xf32, #tpu.memory_space<vmem>>, vector<8x128xf32>
    %c0_1 = arith.constant 0 : index
    %c0_2 = arith.constant 0 : index
    %1 = vector.load %arg3[%c0_1, %c0_2] : memref<16x8xf32, #tpu.memory_space<vmem>>, vector<16x8xf32>
    %cst = arith.constant dense<0.000000e+00> : vector<16x128xf32>
    %2 = tpu.matmul %1, %0, %cst {dimension_numbers = #tpu.dot_dimension_numbers<[1], [0], [0], [1], [0, 0, 1, 1], [], []>} : vector<16x8xf32>, vector<8x128xf32>, vector<16x128xf32> -> vector<16x128xf32>
    %c0_3 = arith.constant 0 : index
    %c0_4 = arith.constant 0 : index
    %3 = vector.load %arg4[%c0_3, %c0_4] : memref<16x1xf32, #tpu.memory_space<vmem>>, vector<16x1xf32>
    %4 = vector.broadcast %3 : vector<16x1xf32> to vector<16x128xf32>
    %5 = arith.addf %2, %4 : vector<16x128xf32>
    %6 = vector.extract_strided_slice %5 {offsets = [0, 0], sizes = [8, 128], strides = [1, 1]} : vector<16x128xf32> to vector<8x128xf32>
    %7 = arith.mulf %0, %6 : vector<8x128xf32>
    %cst_5 = arith.constant dense<0.000000e+00> : vector<128xf32>
    %8 = vector.multi_reduction <add>, %7, %cst_5 [0] : vector<8x128xf32> to vector<128xf32>
    %9 = vector.shape_cast %8 : vector<128xf32> to vector<1x128xf32>
    %10 = vector.extract_strided_slice %5 {offsets = [8, 0], sizes = [8, 128], strides = [1, 1]} : vector<16x128xf32> to vector<8x128xf32>
    %11 = arith.mulf %0, %10 : vector<8x128xf32>
    %cst_6 = arith.constant dense<0.000000e+00> : vector<128xf32>
    %12 = vector.multi_reduction <add>, %11, %cst_6 [0] : vector<8x128xf32> to vector<128xf32>
    %13 = vector.shape_cast %12 : vector<128xf32> to vector<1x128xf32>
    %c0_7 = arith.constant 0 : index
    %14 = memref.load %arg1[%c0_7] : memref<4xf32, #tpu.memory_space<smem>>
    %c1 = arith.constant 1 : index
    %15 = memref.load %arg1[%c1] : memref<4xf32, #tpu.memory_space<smem>>
    %c2 = arith.constant 2 : index
    %16 = memref.load %arg1[%c2] : memref<4xf32, #tpu.memory_space<smem>>
    %17 = vector.broadcast %16 : f32 to vector<1x128xf32>
    %18 = arith.addf %9, %17 : vector<1x128xf32>
    %c3 = arith.constant 3 : index
    %19 = memref.load %arg1[%c3] : memref<4xf32, #tpu.memory_space<smem>>
    %20 = vector.broadcast %19 : f32 to vector<1x128xf32>
    %21 = arith.addf %13, %20 : vector<1x128xf32>
    %cst_8 = arith.constant 0.000000e+00 : f32
    %22 = arith.cmpf ogt, %14, %cst_8 : f32
    %cst_9 = arith.constant -1.000000e+30 : f32
    %23 = vector.broadcast %cst_9 : f32 to vector<1x128xf32>
    %24 = arith.select %22, %18, %23 : vector<1x128xf32>
    %cst_10 = arith.constant 0.000000e+00 : f32
    %25 = arith.cmpf ogt, %15, %cst_10 : f32
    %cst_11 = arith.constant -1.000000e+30 : f32
    %26 = vector.broadcast %cst_11 : f32 to vector<1x128xf32>
    %27 = arith.select %25, %21, %26 : vector<1x128xf32>
    %28 = arith.maximumf %24, %27 : vector<1x128xf32>
    %29 = arith.subf %24, %28 : vector<1x128xf32>
    %30 = math.exp %29 : vector<1x128xf32>
    %31 = vector.broadcast %14 : f32 to vector<1x128xf32>
    %32 = arith.mulf %31, %30 : vector<1x128xf32>
    %33 = arith.subf %27, %28 : vector<1x128xf32>
    %34 = math.exp %33 : vector<1x128xf32>
    %35 = vector.broadcast %15 : f32 to vector<1x128xf32>
    %36 = arith.mulf %35, %34 : vector<1x128xf32>
    %37 = arith.addf %32, %36 : vector<1x128xf32>
    %38 = math.log %37 : vector<1x128xf32>
    %39 = arith.addf %28, %38 : vector<1x128xf32>
    %c0_12 = arith.constant 0 : index
    %c0_13 = arith.constant 0 : index
    %40 = vector.load %arg5[%c0_12, %c0_13] : memref<1x128xf32, #tpu.memory_space<vmem>>, vector<1x128xf32>
    tpu.vector_store %arg5[%c0_12, %c0_13], %39 {strides = array<i32>} : memref<1x128xf32, #tpu.memory_space<vmem>>, vector<1x128xf32>,
    return
  }
  func.func @transform_0(%arg0: i32) -> i32 {
    %c0_i32 = arith.constant 0 : i32
    %c0_i32_0 = arith.constant 0 : i32
    return %c0_i32 : i32
  }
  func.func @transform_1(%arg0: i32) -> (i32, i32) {
    %c0_i32 = arith.constant 0 : i32
    %c0_i32_0 = arith.constant 0 : i32
    return %c0_i32, %arg0 : i32, i32
  }
  func.func @transform_2(%arg0: i32) -> (i32, i32) {
    %c0_i32 = arith.constant 0 : i32
    %c0_i32_0 = arith.constant 0 : i32
    %c0_i32_1 = arith.constant 0 : i32
    return %c0_i32, %c0_i32_0 : i32, i32
  }
  func.func @transform_3(%arg0: i32) -> (i32, i32) {
    %c0_i32 = arith.constant 0 : i32
    %c0_i32_0 = arith.constant 0 : i32
    %c0_i32_1 = arith.constant 0 : i32
    return %c0_i32, %c0_i32_0 : i32, i32
  }
  func.func @transform_4(%arg0: i32) -> (i32, i32) {
    %c0_i32 = arith.constant 0 : i32
    %c0_i32_0 = arith.constant 0 : i32
    return %c0_i32, %arg0 : i32, i32
  }
}

</mosaic_0001>

<llo_original>
// kernel: tpu_custom_call.1
$region0: #{tpu_custom_call.1}
  #allocation0 [shape = 'u32[]', space=smem, size = 0x4, offset = 0x4, fixed_abs, tag = 'smem constant byte address 0x4 - core index']
  #allocation1 [shape = 'u32[72,128]{1,0:T(1,128)}', space=vmem, size = 0x9000, scoped, tag = 'internal scratch']
  %s0 = inlined_call_operand.vmem [shape: f32[4], index: 0, kind: input, shape index: {}]
  %s1 = inlined_call_operand.vmem [shape: f32[8,128], index: 1, kind: input, shape index: {}]
  %s2 = inlined_call_operand.vmem [shape: f32[16,8], index: 2, kind: input, shape index: {}]
  %s3 = inlined_call_operand.vmem [shape: f32[16,1], index: 3, kind: input, shape index: {}]
  %s4 = inlined_call_operand.hbm [shape: f32[1,128], index: 4, kind: output, shape index: {}]
  %s5 = sld [smem:[#allocation0]]
  $region30: #{tpu_custom_call.1} parent=0
    _
  %s7 = ssub.s32 1, %s5
  %s8 = scalar_select 0, %s7, %s5
  $region1: #{tpu_custom_call.1} parent=0
    #allocation2 [shape = 'u8[512]{0}', space=smem, size = 0x200, scoped, tag = 'input window, operand 0, single buffered']
    #allocation3 [shape = 's32[1]{0}', space=sflag, size = 0x4, scoped, tag = 'scoped memory for tpu_custom_call.1']
    #allocation4 [shape = 's32[1]{0}', space=sflag, size = 0x4, scoped, tag = 'scoped memory for tpu_custom_call.1']
    #allocation5 [shape = 'u8[512]{0}', space=vmem, size = 0x400, scoped, tag = 'output window, operand 0, single buffered']
    %9 = vsyncpa [#allocation4], 0
    %10 = vsyncpa [#allocation3], 0
    // Predicated region
    $region2: #{tpu_custom_call.1} parent=1 // pred_check
      _
    $region3: #{tpu_custom_call.1} parent=1 // pred_check_branch
      %12 = sbr.rel (0) target = $region5
    $region4: #{tpu_custom_call.1} parent=1 // pred_region
      %14 = vsyncadd [#allocation4], 0
      %s16 = sshll.u32 %s0, 4
      %s17 = int_to_ptr.vmem [resolvable:$true] %s16
      %19 = dma.vmem_to_smem %s17, 16, [#allocation2], [#allocation4]
    $region5: #{tpu_custom_call.1} parent=1 // pred_fallthru
      _
    // Predicated region
    $region6: #{tpu_custom_call.1} parent=1 // pred_check
      _
    $region7: #{tpu_custom_call.1} parent=1 // pred_check_branch
      %21 = sbr.rel (0) target = $region9
    $region8: #{tpu_custom_call.1} parent=1 // pred_region
      _
    $region9: #{tpu_custom_call.1} parent=1 // pred_fallthru
      _
    // Predicated region
    $region10: #{tpu_custom_call.1} parent=1 // pred_check
      _
    $region11: #{tpu_custom_call.1} parent=1 // pred_check_branch
      %23 = sbr.rel (0) target = $region13
    $region12: #{tpu_custom_call.1} parent=1 // pred_region
      _
    $region13: #{tpu_custom_call.1} parent=1 // pred_fallthru
      _
    // Predicated region
    $region14: #{tpu_custom_call.1} parent=1 // pred_check
      _
    $region15: #{tpu_custom_call.1} parent=1 // pred_check_branch
      %25 = sbr.rel (0) target = $region17
    $region16: #{tpu_custom_call.1} parent=1 // pred_region
      _
    $region17: #{tpu_custom_call.1} parent=1 // pred_fallthru
      _
    // Predicated region
    $region18: #{tpu_custom_call.1} parent=1 // pred_check
      _
    $region19: #{tpu_custom_call.1} parent=1 // pred_check_branch
      %27 = sbr.rel (0) target = $region21
    $region20: #{tpu_custom_call.1} parent=1 // pred_region
      %29 = dma.done [#allocation4], 16
    $region21: #{tpu_custom_call.1} parent=1 // pred_fallthru
      _
    %30 = sfence
    %v31 = vld [vmem:[%s1] sm:$0xff]
    %v32 = vld [vmem:[%s2] sm:$0xff]
    %v33 = vld [vmem:[%s2 + $0x8] sm:$0xff]
    %v34 = vld [vmem:[%s3] sm:$0xff]
    %v35 = vld [vmem:[%s3 + $0x8] sm:$0xff]
    %37 = vset.pattern.permute.xlu0 0
    %38 = vperm.xlu0 %37, %v34
    %v39 = vpop.permute.xlu0 %38
    %42 = vset.pattern.permute.xlu0 0
    %43 = vperm.xlu0 %42, %v35
    %v44 = vpop.permute.xlu0 %43
    %vm46 = vcmask 64512
    %v48 = vsel %vm46, %v32, 0
    %v51 = vsel %vm46, %v33, 0
    %53 = vmatpush.msra.mxu0 0.0
    %54 = vmatpush.msra.mxu0 0.0
    %55 = vmatpush.msra.mxu0 0.0
    %56 = vmatpush.msra.mxu0 0.0
    %57 = vmatpush.msra.mxu0 0.0
    %58 = vmatpush.msra.mxu0 0.0
    %59 = vmatpush.msra.mxu0 0.0
    %60 = vmatpush.msra.mxu0 0.0
    %61 = vmatpush.msra.mxu0 0.0
    %62 = vmatpush.msra.mxu0 0.0
    %63 = vmatpush.msra.mxu0 0.0
    %64 = vmatpush.msra.mxu0 0.0
    %65 = vmatpush.msra.mxu0 0.0
    %66 = vmatpush.msra.mxu0 0.0
    %67 = vmatpush.msra.mxu0 0.0
    %68 = vmatpush.msra.mxu0 %v31
    %69 = vmatmul.f32.gmra.mxu0 %v48
    %v70 = vpop.f32.mrf.mxu0
    %v71 = vadd.f32 %v39, %v70
    %72 = vmatmul.f32.gmra.mxu0 %v51
    %v73 = vpop.f32.mrf.mxu0
    %v74 = vadd.f32 %v44, %v73
    %75 = vdwg.mxu0
    %v76 = vmul.f32 %v31, %v71
    %v77 = vrot.slane %v76, 4
    %v78 = vadd.f32 %v76, %v77
    %v79 = vrot.slane %v78, 2
    %v80 = vadd.f32 %v78, %v79
    %v81 = vrot.slane %v80, 1
    %v82 = vadd.f32 %v80, %v81
    %v83 = vmul.f32 %v31, %v74
    %v84 = vrot.slane %v83, 4
    %v85 = vadd.f32 %v83, %v84
    %v86 = vrot.slane %v85, 2
    %v87 = vadd.f32 %v85, %v86
    %v88 = vrot.slane %v87, 1
    %v89 = vadd.f32 %v87, %v88
    %s90 = sld [smem:[#allocation2]]
    %s91 = sld [smem:[#allocation2 + $0x1]]
    %s92 = sld [smem:[#allocation2 + $0x2]]
    %v93 = vstv %s92
    %v94 = vadd.f32 %v82, %v93
    %s95 = sld [smem:[#allocation2 + $0x3]]
    %v96 = vstv %s95
    %v97 = vadd.f32 %v89, %v96
    %p98 = scmp.gt.f32.partialorder %s90, 0.0
    %s99 = scalar_select %p98, 1, 0
    %v100 = vstv %s99
    %vm101 = vcmp.eq.s32.totalorder %v100, 1
    %v102 = vsel %vm101, %v94, -1e+30
    %p103 = scmp.gt.f32.partialorder %s91, 0.0
    %s104 = scalar_select %p103, 1, 0
    %v105 = vstv %s104
    %vm106 = vcmp.eq.s32.totalorder %v105, 1
    %v107 = vsel %vm106, %v97, -1e+30
    %v108 = vmax.f32 %v102, %v107
    %v109 = vsub.f32 %v102, %v108
    %v110 = vmul.f32 %v109, 1.442695
    %v111 = vpow.pop %v110
    %v112 = vstv %s90
    %v113 = vmul.f32 %v112, %v111
    %v114 = vsub.f32 %v107, %v108
    %v115 = vmul.f32 %v114, 1.442695
    %v116 = vpow.pop %v115
    %v117 = vstv %s91
    %v118 = vmul.f32 %v117, %v116
    %v119 = vadd.f32 %v113, %v118
    %v120 = vlog2.pop %v119
    %v121 = vmul.f32 %v120, 0.6931472
    %v122 = vadd.f32 %v108, %v121
    %123 = vst [vmem:[#allocation5] sm:$0x1] %v122
    // Predicated region
    $region22: #{tpu_custom_call.1} parent=1 // pred_check
      _
    $region23: #{tpu_custom_call.1} parent=1 // pred_check_branch
      %125 = sbr.rel (0) target = $region25
    $region24: #{tpu_custom_call.1} parent=1 // pred_region
      %127 = vsyncadd [#allocation3], 0
      %s129 = sshll.u32 [#allocation5], 4
      %s130 = int_to_ptr.vmem [resolvable:$true] %s129
      %s131 = sshll.u32 %s4, 4
      %s132 = int_to_ptr.hbm [resolvable:$true] %s131
      %134 = dma.vmem_to_hbm [thread:$0]  %s130, 16, %s132, [#allocation3]
    $region25: #{tpu_custom_call.1} parent=1 // pred_fallthru
      _
    // Predicated region
    $region26: #{tpu_custom_call.1} parent=1 // pred_check
      _
    $region27: #{tpu_custom_call.1} parent=1 // pred_check_branch
      %136 = sbr.rel (0) target = $region29
    $region28: #{tpu_custom_call.1} parent=1 // pred_region
      %138 = dma.done [#allocation3], 16
    $region29: #{tpu_custom_call.1} parent=1 // pred_fallthru
      _
    %139 = vsyncpa [#allocation3], 1
    %140 = vsyncpa [#allocation4], 1

</llo_original>
